<compile_context>
chip_gen: v7x
topology: tpu7x:2x2x1
jax: 0.10.0
libtpu: 0.0.40
codegen_flags: <defaults>
</compile_context>

<pallas_src>
import functools

import jax
import jax.numpy as jnp
import numpy as np
from jax.experimental import pallas as pl
from jax.experimental.pallas import tpu as pltpu

_LANE = 128
_SUBLANE = 8


def _round_up(n, m):
    return ((n + m - 1) // m) * m


# ---------------------------------------------------------------------------
# Fused kernel: one batch tile of the whole network.
# refs: x (TB,P) f32 | W_all (NL,P,P) | b_all (NL,1,P) f32 | out (TB,P) f32
# ---------------------------------------------------------------------------
def fused_forward_kernel(x_ref, w_ref, b_ref, o_ref, *,
                         acts, qlo, qhi, step, inv_step):
    mm_dtype = w_ref.dtype
    h = x_ref[...]                                     # (TB, P) f32
    for i, act in enumerate(acts):                     # statically unrolled
        w = w_ref[i]                                   # (P, P) static slice
        b = b_ref[i]                                   # (1, P) f32
        h = jnp.dot(h.astype(mm_dtype), w,
                    preferred_element_type=jnp.float32) + b
        if act == "elu":
            # exp rides the EUP slot; exp(x)-1 vs torch's expm1 differs by
            # ~1e-7 absolute near 0 — far inside the test tolerance.
            h = jnp.where(h > 0.0, h, jnp.exp(jnp.minimum(h, 0.0)) - 1.0)
        elif act == "tanh":
            h = jnp.tanh(h)
        else:  # "quantize"
            # TODO(synk): Quantizer module source not provided; using uniform
            # quantization: clamp to q_interval, round to 2**b levels.
            hc = jnp.clip(h, qlo, qhi)
            h = qlo + jnp.round((hc - qlo) * inv_step) * step
    o_ref[...] = h                                     # lane-dense 128-wide store


def neural_net_conv_forward(x, W_all, b_all, *, acts, qlo, qhi, step, inv_step,
                            out_features, tb_max=256):
    """x: (B, input_size) f32 -> (B, out_features) f32."""
    B, Fin = x.shape
    NL, P, _ = W_all.shape
    tb = min(_round_up(max(B, 1), _SUBLANE), tb_max)
    b_pad = _round_up(max(B, 1), tb)

    # Pad batch (sublanes) and features (lanes) once in the wrapper; padded
    # weight rows are zero, so padded lanes never contaminate real outputs.
    xp = jnp.zeros((b_pad, P), jnp.float32).at[:B, :Fin].set(x)

    kern = functools.partial(fused_forward_kernel, acts=acts, qlo=qlo, qhi=qhi,
                             step=step, inv_step=inv_step)
    y = pl.pallas_call(
        kern,
        out_shape=jax.ShapeDtypeStruct((b_pad, P), jnp.float32),
        grid=(b_pad // tb,),
        in_specs=[
            pl.BlockSpec((tb, P), lambda i: (i, 0)),        # batch tile
            pl.BlockSpec((NL, P, P), lambda i: (0, 0, 0)),  # all weights, resident
            pl.BlockSpec((NL, 1, P), lambda i: (0, 0, 0)),  # all biases, resident
        ],
        out_specs=pl.BlockSpec((tb, P), lambda i: (i, 0)),
        compiler_params=pltpu.CompilerParams(
            dimension_semantics=("parallel",)),             # v7x: use both TCs
    )(xp, W_all, b_all)
    return y[:B, :out_features]


# ---------------------------------------------------------------------------
# Init-time lowering of torch-layout params to dense layers, then packing.
# ---------------------------------------------------------------------------
def conv1d_same_to_dense(w_torch, L):
    """Exact dense operator of Conv1d(padding='same', zeros) acting on the
    channel-major flattened vector (index = c*L + l).  w_torch: (Cout,Cin,K)."""
    Cout, Cin, K = w_torch.shape
    assert K % 2 == 1, "even kernel_size pads asymmetrically; not supported here"
    pad = K // 2
    li = jnp.arange(L)[:, None]                       # input position
    lo = jnp.arange(L)[None, :]                       # output position
    k = li - lo + pad                                 # tap hitting (li, lo)
    valid = (k >= 0) & (k < K)
    k = jnp.clip(k, 0, K - 1)
    wt = jnp.transpose(w_torch, (1, 0, 2))            # (Cin, Cout, K)
    band = wt[:, :, k] * valid[None, None].astype(w_torch.dtype)  # (Cin,Cout,L,L)
    return jnp.transpose(band, (0, 2, 1, 3)).reshape(Cin * L, Cout * L)


def conv_bias_to_dense(b_torch, L):
    return jnp.repeat(b_torch, L).reshape(1, -1)      # bias[c*L + l] = bias[c]


def prepare_fused_layers(params, cfg):
    """convs -> dense Toeplitz matrices (channel-major flatten order, so
    torch.flatten is the identity); linears -> (Fin,Fout) = torch_weight.T."""
    L = cfg["input_size"]
    layers = []
    for (w, b) in params["enc_convs"]:
        layers.append((conv1d_same_to_dense(w, L), conv_bias_to_dense(b, L), "elu"))
    qw, qb = params["quant"]
    layers.append((qw.T, qb.reshape(1, -1), "quantize"))
    pw, pb = params["dec_prep"]
    layers.append((pw.T, pb.reshape(1, -1), "elu"))
    for (w, b) in params["dec_convs"]:
        layers.append((conv1d_same_to_dense(w, L), conv_bias_to_dense(b, L), "elu"))
    ow, ob = params["dec_out"]
    layers.append((ow.T, ob.reshape(1, -1), "tanh"))
    return [(jnp.asarray(w, jnp.float32), jnp.asarray(b, jnp.float32), a)
            for (w, b, a) in layers]


def pack_layers(fused_layers, matmul_dtype=jnp.float32):
    """Zero-pad every (Fin,Fout) operator to (P,P), stack into W_all:(NL,P,P)
    and b_all:(NL,1,P): 3 tile-aligned kernel inputs instead of 19 tiny DMAs,
    and the whole activation chain stays 128-lane dense.
    matmul_dtype=jnp.bfloat16 is an MXU win on v6e/v7x but drifts beyond the
    1e-4 check over 9 chained matmuls, so the default stays f32 here."""
    dims = [w.shape for (w, _, _) in fused_layers]
    P = _round_up(max(max(fi, fo) for (fi, fo) in dims), _LANE)
    NL = len(fused_layers)
    W_all = np.zeros((NL, P, P), np.float32)
    b_all = np.zeros((NL, 1, P), np.float32)
    acts = []
    for i, (w, b, a) in enumerate(fused_layers):
        fin, fout = w.shape
        W_all[i, :fin, :fout] = np.asarray(w, np.float32)
        b_all[i, 0, :fout] = np.asarray(b, np.float32).reshape(-1)
        acts.append(a)
    # quantize(0) != 0, so padded lanes after the quantize layer are nonzero;
    # correctness requires the NEXT layer's padded weight rows to be exactly 0.
    for i in range(1, NL):
        fin_i = dims[i][0]
        assert not np.any(W_all[i, fin_i:, :]), "padded weight rows must be zero"
    # Dense Toeplitz operators grow as L^2 in VMEM; fine at L=16.
    # TODO(synk): for large input_size (L ~> 200 on v7x's 32 MiB scoped VMEM)
    # switch the convs to K shifted matmuls (pltpu.roll) instead of dense ops.
    assert NL * P * P * 4 < 16 * 1024 * 1024, "packed weights too large for VMEM"
    return (jnp.asarray(W_all, matmul_dtype),
            jnp.asarray(b_all, jnp.float32),
            tuple(acts))


def init_params(key, cfg):
    K = cfg["kernel_size"]
    L = cfg["input_size"]
    cn = cfg["channel_nums"]

    def nxt():
        nonlocal key
        key, sub = jax.random.split(key)
        return sub

    def conv_param(cin, cout):
        w = jax.random.normal(nxt(), (cout, cin, K), jnp.float32) / jnp.sqrt(cin * K)
        b = 0.1 * jax.random.normal(nxt(), (cout,), jnp.float32)
        return w, b

    def lin_param(fin, fout):
        w = jax.random.normal(nxt(), (fout, fin), jnp.float32) / jnp.sqrt(fin)
        b = 0.1 * jax.random.normal(nxt(), (fout,), jnp.float32)
        return w, b

    params = {"enc_convs": [], "dec_convs": []}
    lastdim = 1
    for c in cn:
        params["enc_convs"].append(conv_param(lastdim, c))
        lastdim = c
    params["quant"] = lin_param(cn[2] * L, cfg["q_nodes"])
    params["dec_prep"] = lin_param(cfg["q_nodes"], L)
    lastdim = 1
    for c in reversed(cn):
        params["dec_convs"].append(conv_param(lastdim, c))
        lastdim = c
    params["dec_out"] = lin_param(cn[0] * L, L)
    return params


# ---------------------------------------------------------------------------
# Pure-JAX reference mirroring the torch module (correctness check only).
# ---------------------------------------------------------------------------
def _conv1d_same_ref(x_ncl, w, b):
    B, Cin, L = x_ncl.shape
    Cout, _, K = w.shape
    pad = K // 2
    xp = jnp.pad(x_ncl, ((0, 0), (0, 0), (pad, pad)))
    out = jnp.zeros((B, Cout, L), jnp.float32)
    for k in range(K):
        out = out + jnp.einsum("bcl,oc->bol", xp[:, :, k:k + L], w[:, :, k])
    return out + b[None, :, None]


def _elu_ref(x):
    return jnp.where(x > 0.0, x, jnp.expm1(x))


def _quantize_ref(x, qbits, q_interval):
    qlo, qhi = float(q_interval[0]), float(q_interval[1])
    step = (qhi - qlo) / float(2 ** qbits - 1)
    xc = jnp.clip(x, qlo, qhi)
    return qlo + jnp.round((xc - qlo) * (1.0 / step)) * step


def reference_forward(x, params, cfg):
    B = x.shape[0]
    out = x[:, None, :]                               # unsqueeze(1) -> NCL
    for (w, b) in params["enc_convs"]:
        out = _elu_ref(_conv1d_same_ref(out, w, b))
    out = out.reshape(B, -1)                          # torch.flatten(out, 1)
    qw, qb = params["quant"]
    out = _quantize_ref(out @ qw.T + qb, cfg["b"], cfg["q_interval"])
    pw, pb = params["dec_prep"]
    out = _elu_ref(out @ pw.T + pb)
    out = out[:, None, :]
    for (w, b) in params["dec_convs"]:
        out = _elu_ref(_conv1d_same_ref(out, w, b))
    out = out.reshape(B, -1)
    ow, ob = params["dec_out"]
    return jnp.tanh(out @ ow.T + ob)


if __name__ == "__main__":
    cfg = dict(
        input_size=16,
        b=4,
        q_interval=(-1.0, 1.0),
        q_nodes=8,
        kernel_size=3,
        channel_nums=(4, 8, 6),
    )
    key = jax.random.PRNGKey(0)
    key, pkey, xkey = jax.random.split(key, 3)
    params = init_params(pkey, cfg)
    fused_layers = prepare_fused_layers(params, cfg)        # one-time lowering
    W_all, b_all, acts = pack_layers(fused_layers)          # 2 packed operands

    qlo, qhi = float(cfg["q_interval"][0]), float(cfg["q_interval"][1])
    step = (qhi - qlo) / float(2 ** int(cfg["b"]) - 1)
    fwd = jax.jit(functools.partial(
        neural_net_conv_forward,
        acts=acts, qlo=qlo, qhi=qhi, step=step, inv_step=1.0 / step,
        out_features=cfg["input_size"]))

    x = jax.random.normal(xkey, (2, cfg["input_size"]), jnp.float32)
    y = fwd(x, W_all, b_all)
    jax.block_until_ready(y)

    y_ref = reference_forward(x, params, cfg)
    np.testing.assert_allclose(np.asarray(y), np.asarray(y_ref),
                               rtol=1e-4, atol=1e-4)
    assert y.shape == (2, cfg["input_size"]) and y.dtype == jnp.float32
    print("KERNEL_OK")
</pallas_src>

<mosaic_0001>
module attributes {stable_mosaic.version = 11 : i64} {
  func.func @fused_forward_kernel(%arg0: i32, %arg1: memref<8x128xf32, #tpu.memory_space<vmem>>, %arg2: memref<9x128x128xf32, #tpu.memory_space<vmem>>, %arg3: memref<9x1x128xf32, #tpu.memory_space<vmem>>, %arg4: memref<8x128xf32, #tpu.memory_space<vmem>>) attributes {dimension_semantics = [#tpu.dimension_semantics<parallel>], iteration_bounds = array<i64: 1>, scalar_prefetch = 0 : i64, scratch_operands = 0 : i64, tpu.core_type = #tpu.core_type<tc>, window_params = [{transform_indices = @transform_0, window_bounds = array<i64: 8, 128>}, {pipeline_mode = #tpu.pipeline_mode<synchronous>, transform_indices = @transform_1, window_bounds = array<i64: 9, 128, 128>}, {pipeline_mode = #tpu.pipeline_mode<synchronous>, transform_indices = @transform_2, window_bounds = array<i64: 9, 1, 128>}, {transform_indices = @transform_3, window_bounds = array<i64: 8, 128>}]} {
    %c0 = arith.constant 0 : index
    %c0_0 = arith.constant 0 : index
    %0 = vector.load %arg1[%c0, %c0_0] : memref<8x128xf32, #tpu.memory_space<vmem>>, vector<8x128xf32>
    %c0_1 = arith.constant 0 : index
    %c0_2 = arith.constant 0 : index
    %c0_3 = arith.constant 0 : index
    %1 = vector.load %arg2[%c0_1, %c0_2, %c0_3] : memref<9x128x128xf32, #tpu.memory_space<vmem>>, vector<1x128x128xf32>
    %2 = vector.shape_cast %1 : vector<1x128x128xf32> to vector<128x128xf32>
    %c0_4 = arith.constant 0 : index
    %c0_5 = arith.constant 0 : index
    %c0_6 = arith.constant 0 : index
    %3 = vector.load %arg3[%c0_4, %c0_5, %c0_6] : memref<9x1x128xf32, #tpu.memory_space<vmem>>, vector<1x1x128xf32>
    %4 = vector.shape_cast %3 : vector<1x1x128xf32> to vector<1x128xf32>
    %cst = arith.constant dense<0.000000e+00> : vector<8x128xf32>
    %5 = tpu.matmul %0, %2, %cst {dimension_numbers = #tpu.dot_dimension_numbers<[1], [0], [0], [1], [0, 0, 1, 1], [], []>} : vector<8x128xf32>, vector<128x128xf32>, vector<8x128xf32> -> vector<8x128xf32>
    %6 = vector.broadcast %4 : vector<1x128xf32> to vector<8x128xf32>
    %7 = arith.addf %5, %6 : vector<8x128xf32>
    %cst_7 = arith.constant 0.000000e+00 : f32
    %8 = vector.broadcast %cst_7 : f32 to vector<8x128xf32>
    %9 = arith.cmpf ogt, %7, %8 : vector<8x128xf32>
    %cst_8 = arith.constant 0.000000e+00 : f32
    %10 = vector.broadcast %cst_8 : f32 to vector<8x128xf32>
    %11 = arith.minimumf %7, %10 : vector<8x128xf32>
    %12 = math.exp %11 : vector<8x128xf32>
    %cst_9 = arith.constant 1.000000e+00 : f32
    %13 = vector.broadcast %cst_9 : f32 to vector<8x128xf32>
    %14 = arith.subf %12, %13 : vector<8x128xf32>
    %15 = arith.select %9, %7, %14 : vector<8x128xi1>, vector<8x128xf32>
    %c1 = arith.constant 1 : index
    %c0_10 = arith.constant 0 : index
    %c0_11 = arith.constant 0 : index
    %16 = vector.load %arg2[%c1, %c0_10, %c0_11] : memref<9x128x128xf32, #tpu.memory_space<vmem>>, vector<1x128x128xf32>
    %17 = vector.shape_cast %16 : vector<1x128x128xf32> to vector<128x128xf32>
    %c1_12 = arith.constant 1 : index
    %c0_13 = arith.constant 0 : index
    %c0_14 = arith.constant 0 : index
    %18 = vector.load %arg3[%c1_12, %c0_13, %c0_14] : memref<9x1x128xf32, #tpu.memory_space<vmem>>, vector<1x1x128xf32>
    %19 = vector.shape_cast %18 : vector<1x1x128xf32> to vector<1x128xf32>
    %cst_15 = arith.constant dense<0.000000e+00> : vector<8x128xf32>
    %20 = tpu.matmul %15, %17, %cst_15 {dimension_numbers = #tpu.dot_dimension_numbers<[1], [0], [0], [1], [0, 0, 1, 1], [], []>} : vector<8x128xf32>, vector<128x128xf32>, vector<8x128xf32> -> vector<8x128xf32>
    %21 = vector.broadcast %19 : vector<1x128xf32> to vector<8x128xf32>
    %22 = arith.addf %20, %21 : vector<8x128xf32>
    %cst_16 = arith.constant 0.000000e+00 : f32
    %23 = vector.broadcast %cst_16 : f32 to vector<8x128xf32>
    %24 = arith.cmpf ogt, %22, %23 : vector<8x128xf32>
    %cst_17 = arith.constant 0.000000e+00 : f32
    %25 = vector.broadcast %cst_17 : f32 to vector<8x128xf32>
    %26 = arith.minimumf %22, %25 : vector<8x128xf32>
    %27 = math.exp %26 : vector<8x128xf32>
    %cst_18 = arith.constant 1.000000e+00 : f32
    %28 = vector.broadcast %cst_18 : f32 to vector<8x128xf32>
    %29 = arith.subf %27, %28 : vector<8x128xf32>
    %30 = arith.select %24, %22, %29 : vector<8x128xi1>, vector<8x128xf32>
    %c2 = arith.constant 2 : index
    %c0_19 = arith.constant 0 : index
    %c0_20 = arith.constant 0 : index
    %31 = vector.load %arg2[%c2, %c0_19, %c0_20] : memref<9x128x128xf32, #tpu.memory_space<vmem>>, vector<1x128x128xf32>
    %32 = vector.shape_cast %31 : vector<1x128x128xf32> to vector<128x128xf32>
    %c2_21 = arith.constant 2 : index
    %c0_22 = arith.constant 0 : index
    %c0_23 = arith.constant 0 : index
    %33 = vector.load %arg3[%c2_21, %c0_22, %c0_23] : memref<9x1x128xf32, #tpu.memory_space<vmem>>, vector<1x1x128xf32>
    %34 = vector.shape_cast %33 : vector<1x1x128xf32> to vector<1x128xf32>
    %cst_24 = arith.constant dense<0.000000e+00> : vector<8x128xf32>
    %35 = tpu.matmul %30, %32, %cst_24 {dimension_numbers = #tpu.dot_dimension_numbers<[1], [0], [0], [1], [0, 0, 1, 1], [], []>} : vector<8x128xf32>, vector<128x128xf32>, vector<8x128xf32> -> vector<8x128xf32>
    %36 = vector.broadcast %34 : vector<1x128xf32> to vector<8x128xf32>
    %37 = arith.addf %35, %36 : vector<8x128xf32>
    %cst_25 = arith.constant 0.000000e+00 : f32
    %38 = vector.broadcast %cst_25 : f32 to vector<8x128xf32>
    %39 = arith.cmpf ogt, %37, %38 : vector<8x128xf32>
    %cst_26 = arith.constant 0.000000e+00 : f32
    %40 = vector.broadcast %cst_26 : f32 to vector<8x128xf32>
    %41 = arith.minimumf %37, %40 : vector<8x128xf32>
    %42 = math.exp %41 : vector<8x128xf32>
    %cst_27 = arith.constant 1.000000e+00 : f32
    %43 = vector.broadcast %cst_27 : f32 to vector<8x128xf32>
    %44 = arith.subf %42, %43 : vector<8x128xf32>
    %45 = arith.select %39, %37, %44 : vector<8x128xi1>, vector<8x128xf32>
    %c3 = arith.constant 3 : index
    %c0_28 = arith.constant 0 : index
    %c0_29 = arith.constant 0 : index
    %46 = vector.load %arg2[%c3, %c0_28, %c0_29] : memref<9x128x128xf32, #tpu.memory_space<vmem>>, vector<1x128x128xf32>
    %47 = vector.shape_cast %46 : vector<1x128x128xf32> to vector<128x128xf32>
    %c3_30 = arith.constant 3 : index
    %c0_31 = arith.constant 0 : index
    %c0_32 = arith.constant 0 : index
    %48 = vector.load %arg3[%c3_30, %c0_31, %c0_32] : memref<9x1x128xf32, #tpu.memory_space<vmem>>, vector<1x1x128xf32>
    %49 = vector.shape_cast %48 : vector<1x1x128xf32> to vector<1x128xf32>
    %cst_33 = arith.constant dense<0.000000e+00> : vector<8x128xf32>
    %50 = tpu.matmul %45, %47, %cst_33 {dimension_numbers = #tpu.dot_dimension_numbers<[1], [0], [0], [1], [0, 0, 1, 1], [], []>} : vector<8x128xf32>, vector<128x128xf32>, vector<8x128xf32> -> vector<8x128xf32>
    %51 = vector.broadcast %49 : vector<1x128xf32> to vector<8x128xf32>
    %52 = arith.addf %50, %51 : vector<8x128xf32>
    %cst_34 = arith.constant -1.000000e+00 : f32
    %cst_35 = arith.constant 1.000000e+00 : f32
    %53 = vector.broadcast %cst_34 : f32 to vector<8x128xf32>
    %54 = arith.maximumf %53, %52 : vector<8x128xf32>
    %55 = vector.broadcast %cst_35 : f32 to vector<8x128xf32>
    %56 = arith.minimumf %55, %54 : vector<8x128xf32>
    %cst_36 = arith.constant -1.000000e+00 : f32
    %57 = vector.broadcast %cst_36 : f32 to vector<8x128xf32>
    %58 = arith.subf %56, %57 : vector<8x128xf32>
    %cst_37 = arith.constant 7.500000e+00 : f32
    %59 = vector.broadcast %cst_37 : f32 to vector<8x128xf32>
    %60 = arith.mulf %58, %59 : vector<8x128xf32>
    %61 = math.roundeven %60 : vector<8x128xf32>
    %cst_38 = arith.constant 0.13333334 : f32
    %62 = vector.broadcast %cst_38 : f32 to vector<8x128xf32>
    %63 = arith.mulf %61, %62 : vector<8x128xf32>
    %cst_39 = arith.constant -1.000000e+00 : f32
    %64 = vector.broadcast %cst_39 : f32 to vector<8x128xf32>
    %65 = arith.addf %64, %63 : vector<8x128xf32>
    %c4 = arith.constant 4 : index
    %c0_40 = arith.constant 0 : index
    %c0_41 = arith.constant 0 : index
    %66 = vector.load %arg2[%c4, %c0_40, %c0_41] : memref<9x128x128xf32, #tpu.memory_space<vmem>>, vector<1x128x128xf32>
    %67 = vector.shape_cast %66 : vector<1x128x128xf32> to vector<128x128xf32>
    %c4_42 = arith.constant 4 : index
    %c0_43 = arith.constant 0 : index
    %c0_44 = arith.constant 0 : index
    %68 = vector.load %arg3[%c4_42, %c0_43, %c0_44] : memref<9x1x128xf32, #tpu.memory_space<vmem>>, vector<1x1x128xf32>
    %69 = vector.shape_cast %68 : vector<1x1x128xf32> to vector<1x128xf32>
    %cst_45 = arith.constant dense<0.000000e+00> : vector<8x128xf32>
    %70 = tpu.matmul %65, %67, %cst_45 {dimension_numbers = #tpu.dot_dimension_numbers<[1], [0], [0], [1], [0, 0, 1, 1], [], []>} : vector<8x128xf32>, vector<128x128xf32>, vector<8x128xf32> -> vector<8x128xf32>
    %71 = vector.broadcast %69 : vector<1x128xf32> to vector<8x128xf32>
    %72 = arith.addf %70, %71 : vector<8x128xf32>
    %cst_46 = arith.constant 0.000000e+00 : f32
    %73 = vector.broadcast %cst_46 : f32 to vector<8x128xf32>
    %74 = arith.cmpf ogt, %72, %73 : vector<8x128xf32>
    %cst_47 = arith.constant 0.000000e+00 : f32
    %75 = vector.broadcast %cst_47 : f32 to vector<8x128xf32>
    %76 = arith.minimumf %72, %75 : vector<8x128xf32>
    %77 = math.exp %76 : vector<8x128xf32>
    %cst_48 = arith.constant 1.000000e+00 : f32
    %78 = vector.broadcast %cst_48 : f32 to vector<8x128xf32>
    %79 = arith.subf %77, %78 : vector<8x128xf32>
    %80 = arith.select %74, %72, %79 : vector<8x128xi1>, vector<8x128xf32>
    %c5 = arith.constant 5 : index
    %c0_49 = arith.constant 0 : index
    %c0_50 = arith.constant 0 : index
    %81 = vector.load %arg2[%c5, %c0_49, %c0_50] : memref<9x128x128xf32, #tpu.memory_space<vmem>>, vector<1x128x128xf32>
    %82 = vector.shape_cast %81 : vector<1x128x128xf32> to vector<128x128xf32>
    %c5_51 = arith.constant 5 : index
    %c0_52 = arith.constant 0 : index
    %c0_53 = arith.constant 0 : index
    %83 = vector.load %arg3[%c5_51, %c0_52, %c0_53] : memref<9x1x128xf32, #tpu.memory_space<vmem>>, vector<1x1x128xf32>
    %84 = vector.shape_cast %83 : vector<1x1x128xf32> to vector<1x128xf32>
    %cst_54 = arith.constant dense<0.000000e+00> : vector<8x128xf32>
    %85 = tpu.matmul %80, %82, %cst_54 {dimension_numbers = #tpu.dot_dimension_numbers<[1], [0], [0], [1], [0, 0, 1, 1], [], []>} : vector<8x128xf32>, vector<128x128xf32>, vector<8x128xf32> -> vector<8x128xf32>
    %86 = vector.broadcast %84 : vector<1x128xf32> to vector<8x128xf32>
    %87 = arith.addf %85, %86 : vector<8x128xf32>
    %cst_55 = arith.constant 0.000000e+00 : f32
    %88 = vector.broadcast %cst_55 : f32 to vector<8x128xf32>
    %89 = arith.cmpf ogt, %87, %88 : vector<8x128xf32>
    %cst_56 = arith.constant 0.000000e+00 : f32
    %90 = vector.broadcast %cst_56 : f32 to vector<8x128xf32>
    %91 = arith.minimumf %87, %90 : vector<8x128xf32>
    %92 = math.exp %91 : vector<8x128xf32>
    %cst_57 = arith.constant 1.000000e+00 : f32
    %93 = vector.broadcast %cst_57 : f32 to vector<8x128xf32>
    %94 = arith.subf %92, %93 : vector<8x128xf32>
    %95 = arith.select %89, %87, %94 : vector<8x128xi1>, vector<8x128xf32>
    %c6 = arith.constant 6 : index
    %c0_58 = arith.constant 0 : index
    %c0_59 = arith.constant 0 : index
    %96 = vector.load %arg2[%c6, %c0_58, %c0_59] : memref<9x128x128xf32, #tpu.memory_space<vmem>>, vector<1x128x128xf32>
    %97 = vector.shape_cast %96 : vector<1x128x128xf32> to vector<128x128xf32>
    %c6_60 = arith.constant 6 : index
    %c0_61 = arith.constant 0 : index
    %c0_62 = arith.constant 0 : index
    %98 = vector.load %arg3[%c6_60, %c0_61, %c0_62] : memref<9x1x128xf32, #tpu.memory_space<vmem>>, vector<1x1x128xf32>
    %99 = vector.shape_cast %98 : vector<1x1x128xf32> to vector<1x128xf32>
    %cst_63 = arith.constant dense<0.000000e+00> : vector<8x128xf32>
    %100 = tpu.matmul %95, %97, %cst_63 {dimension_numbers = #tpu.dot_dimension_numbers<[1], [0], [0], [1], [0, 0, 1, 1], [], []>} : vector<8x128xf32>, vector<128x128xf32>, vector<8x128xf32> -> vector<8x128xf32>
    %101 = vector.broadcast %99 : vector<1x128xf32> to vector<8x128xf32>
    %102 = arith.addf %100, %101 : vector<8x128xf32>
    %cst_64 = arith.constant 0.000000e+00 : f32
    %103 = vector.broadcast %cst_64 : f32 to vector<8x128xf32>
    %104 = arith.cmpf ogt, %102, %103 : vector<8x128xf32>
    %cst_65 = arith.constant 0.000000e+00 : f32
    %105 = vector.broadcast %cst_65 : f32 to vector<8x128xf32>
    %106 = arith.minimumf %102, %105 : vector<8x128xf32>
    %107 = math.exp %106 : vector<8x128xf32>
    %cst_66 = arith.constant 1.000000e+00 : f32
    %108 = vector.broadcast %cst_66 : f32 to vector<8x128xf32>
    %109 = arith.subf %107, %108 : vector<8x128xf32>
    %110 = arith.select %104, %102, %109 : vector<8x128xi1>, vector<8x128xf32>
    %c7 = arith.constant 7 : index
    %c0_67 = arith.constant 0 : index
    %c0_68 = arith.constant 0 : index
    %111 = vector.load %arg2[%c7, %c0_67, %c0_68] : memref<9x128x128xf32, #tpu.memory_space<vmem>>, vector<1x128x128xf32>
    %112 = vector.shape_cast %111 : vector<1x128x128xf32> to vector<128x128xf32>
    %c7_69 = arith.constant 7 : index
    %c0_70 = arith.constant 0 : index
    %c0_71 = arith.constant 0 : index
    %113 = vector.load %arg3[%c7_69, %c0_70, %c0_71] : memref<9x1x128xf32, #tpu.memory_space<vmem>>, vector<1x1x128xf32>
    %114 = vector.shape_cast %113 : vector<1x1x128xf32> to vector<1x128xf32>
    %cst_72 = arith.constant dense<0.000000e+00> : vector<8x128xf32>
    %115 = tpu.matmul %110, %112, %cst_72 {dimension_numbers = #tpu.dot_dimension_numbers<[1], [0], [0], [1], [0, 0, 1, 1], [], []>} : vector<8x128xf32>, vector<128x128xf32>, vector<8x128xf32> -> vector<8x128xf32>
    %116 = vector.broadcast %114 : vector<1x128xf32> to vector<8x128xf32>
    %117 = arith.addf %115, %116 : vector<8x128xf32>
    %cst_73 = arith.constant 0.000000e+00 : f32
    %118 = vector.broadcast %cst_73 : f32 to vector<8x128xf32>
    %119 = arith.cmpf ogt, %117, %118 : vector<8x128xf32>
    %cst_74 = arith.constant 0.000000e+00 : f32
    %120 = vector.broadcast %cst_74 : f32 to vector<8x128xf32>
    %121 = arith.minimumf %117, %120 : vector<8x128xf32>
    %122 = math.exp %121 : vector<8x128xf32>
    %cst_75 = arith.constant 1.000000e+00 : f32
    %123 = vector.broadcast %cst_75 : f32 to vector<8x128xf32>
    %124 = arith.subf %122, %123 : vector<8x128xf32>
    %125 = arith.select %119, %117, %124 : vector<8x128xi1>, vector<8x128xf32>
    %c8 = arith.constant 8 : index
    %c0_76 = arith.constant 0 : index
    %c0_77 = arith.constant 0 : index
    %126 = vector.load %arg2[%c8, %c0_76, %c0_77] : memref<9x128x128xf32, #tpu.memory_space<vmem>>, vector<1x128x128xf32>
    %127 = vector.shape_cast %126 : vector<1x128x128xf32> to vector<128x128xf32>
    %c8_78 = arith.constant 8 : index
    %c0_79 = arith.constant 0 : index
    %c0_80 = arith.constant 0 : index
    %128 = vector.load %arg3[%c8_78, %c0_79, %c0_80] : memref<9x1x128xf32, #tpu.memory_space<vmem>>, vector<1x1x128xf32>
    %129 = vector.shape_cast %128 : vector<1x1x128xf32> to vector<1x128xf32>
    %cst_81 = arith.constant dense<0.000000e+00> : vector<8x128xf32>
    %130 = tpu.matmul %125, %127, %cst_81 {dimension_numbers = #tpu.dot_dimension_numbers<[1], [0], [0], [1], [0, 0, 1, 1], [], []>} : vector<8x128xf32>, vector<128x128xf32>, vector<8x128xf32> -> vector<8x128xf32>
    %131 = vector.broadcast %129 : vector<1x128xf32> to vector<8x128xf32>
    %132 = arith.addf %130, %131 : vector<8x128xf32>
    %133 = math.tanh %132 : vector<8x128xf32>
    %c0_82 = arith.constant 0 : index
    %c0_83 = arith.constant 0 : index
    %134 = vector.load %arg4[%c0_82, %c0_83] : memref<8x128xf32, #tpu.memory_space<vmem>>, vector<8x128xf32>
    tpu.vector_store %arg4[%c0_82, %c0_83], %133 {strides = array<i32>} : memref<8x128xf32, #tpu.memory_space<vmem>>, vector<8x128xf32>,
    return
  }
  func.func @transform_0(%arg0: i32) -> (i32, i32) {
    %c0_i32 = arith.constant 0 : i32
    %c0_i32_0 = arith.constant 0 : i32
    return %arg0, %c0_i32 : i32, i32
  }
  func.func @transform_1(%arg0: i32) -> (i32, i32, i32) {
    %c0_i32 = arith.constant 0 : i32
    %c0_i32_0 = arith.constant 0 : i32
    %c0_i32_1 = arith.constant 0 : i32
    %c0_i32_2 = arith.constant 0 : i32
    return %c0_i32, %c0_i32_0, %c0_i32_1 : i32, i32, i32
  }
  func.func @transform_2(%arg0: i32) -> (i32, i32, i32) {
    %c0_i32 = arith.constant 0 : i32
    %c0_i32_0 = arith.constant 0 : i32
    %c0_i32_1 = arith.constant 0 : i32
    %c0_i32_2 = arith.constant 0 : i32
    return %c0_i32, %c0_i32_0, %c0_i32_1 : i32, i32, i32
  }
  func.func @transform_3(%arg0: i32) -> (i32, i32) {
    %c0_i32 = arith.constant 0 : i32
    %c0_i32_0 = arith.constant 0 : i32
    return %arg0, %c0_i32 : i32, i32
  }
}

</mosaic_0001>

<llo_original>
// kernel: neural_net_conv_forward.1
$region0: #{neural_net_conv_forward.1}
  #allocation0 [shape = 'u32[]', space=smem, size = 0x4, offset = 0x4, fixed_abs, tag = 'smem constant byte address 0x4 - core index']
  #allocation1 [shape = 'u32[144,128]{1,0:T(1,128)}', space=vmem, size = 0x12000, scoped, tag = 'internal scratch']
  %s0 = inlined_call_operand.vmem [shape: f32[8,128], index: 0, kind: input, shape index: {}]
  %s1 = inlined_call_operand.hbm [shape: f32[9,128,128], index: 1, kind: input, shape index: {}]
  %s2 = inlined_call_operand.vmem [shape: f32[9,1,128], index: 2, kind: input, shape index: {}]
  %s3 = inlined_call_operand.vmem [shape: f32[8,128], index: 3, kind: output, shape index: {}]
  %s4 = sld [smem:[#allocation0]]
  $region26: #{neural_net_conv_forward.1} parent=0
    _
  %s6 = ssub.s32 1, %s4
  %s7 = scalar_select 0, %s6, %s4
  $region1: #{neural_net_conv_forward.1} parent=0
    #allocation2 [shape = 'u8[589824]{0}', space=vmem, size = 0x90000, scoped, tag = 'input window, operand 1, single buffered']
    #allocation3 [shape = 's32[1]{0}', space=sflag, size = 0x4, scoped, tag = 'scoped memory for neural_net_conv_forward.1']
    %8 = vsyncpa [#allocation3], 0
    // Predicated region
    $region2: #{neural_net_conv_forward.1} parent=1 // pred_check
      _
    $region3: #{neural_net_conv_forward.1} parent=1 // pred_check_branch
      %10 = sbr.rel (0) target = $region5
    $region4: #{neural_net_conv_forward.1} parent=1 // pred_region
      _
    $region5: #{neural_net_conv_forward.1} parent=1 // pred_fallthru
      _
    // Predicated region
    $region6: #{neural_net_conv_forward.1} parent=1 // pred_check
      _
    $region7: #{neural_net_conv_forward.1} parent=1 // pred_check_branch
      %12 = sbr.rel (0) target = $region9
    $region8: #{neural_net_conv_forward.1} parent=1 // pred_region
      %s14 = ssub.s32 18432, 18432
      %15 = vsyncadd [#allocation3], %s14
      %s16 = sshll.u32 [#allocation2], 4
      %s17 = int_to_ptr.vmem [resolvable:$true] %s16
      %22 = dma.hbm_to_vmem [thread:$0]  %s1, 18432, %s17, [#allocation3], 128, 128, 8
    $region9: #{neural_net_conv_forward.1} parent=1 // pred_fallthru
      _
    // Predicated region
    $region10: #{neural_net_conv_forward.1} parent=1 // pred_check
      _
    $region11: #{neural_net_conv_forward.1} parent=1 // pred_check_branch
      %24 = sbr.rel (0) target = $region13
    $region12: #{neural_net_conv_forward.1} parent=1 // pred_region
      _
    $region13: #{neural_net_conv_forward.1} parent=1 // pred_fallthru
      _
    // Predicated region
    $region14: #{neural_net_conv_forward.1} parent=1 // pred_check
      _
    $region15: #{neural_net_conv_forward.1} parent=1 // pred_check_branch
      %26 = sbr.rel (0) target = $region17
    $region16: #{neural_net_conv_forward.1} parent=1 // pred_region
      %27 = dma.done [#allocation3], 18432
    $region17: #{neural_net_conv_forward.1} parent=1 // pred_fallthru
      _
    %v28 = vld [vmem:[%s0] sm:$0xff]
    %v29 = vld [vmem:[#allocation2] sm:$0xff]
    %v30 = vld [vmem:[#allocation2 + $0x8] sm:$0xff]
    %v31 = vld [vmem:[#allocation2 + $0x10] sm:$0xff]
    %v32 = vld [vmem:[#allocation2 + $0x18] sm:$0xff]
    %v33 = vld [vmem:[#allocation2 + $0x20] sm:$0xff]
    %v34 = vld [vmem:[#allocation2 + $0x28] sm:$0xff]
    %v35 = vld [vmem:[#allocation2 + $0x30] sm:$0xff]
    %v36 = vld [vmem:[#allocation2 + $0x38] sm:$0xff]
    %v37 = vld [vmem:[#allocation2 + $0x40] sm:$0xff]
    %v38 = vld [vmem:[#allocation2 + $0x48] sm:$0xff]
    %v39 = vld [vmem:[#allocation2 + $0x50] sm:$0xff]
    %v40 = vld [vmem:[#allocation2 + $0x58] sm:$0xff]
    %v41 = vld [vmem:[#allocation2 + $0x60] sm:$0xff]
    %v42 = vld [vmem:[#allocation2 + $0x68] sm:$0xff]
    %v43 = vld [vmem:[#allocation2 + $0x70] sm:$0xff]
    %v44 = vld [vmem:[#allocation2 + $0x78] sm:$0xff]
    %v45 = vld [vmem:[%s2] sm:$0x1]
    %v47 = vlaneseq
    %v48 = vshrl.u32 %v47, 7
    %v49 = vsub.s32 0, %v48
    %v50 = vrot.slane %v45, %v49
    %52 = vmatprep.subr.mxu0 0.0
    %53 = vmatpush1.msra.mxu0 %v29
    %54 = vmatprep.subr.mxu0 0.0
    %55 = vmatpush1.msra.mxu0 %v30
    %56 = vmatprep.subr.mxu0 0.0
    %57 = vmatpush1.msra.mxu0 %v31
    %58 = vmatprep.subr.mxu0 0.0
    %59 = vmatpush1.msra.mxu0 %v32
    %60 = vmatprep.subr.mxu0 0.0
    %61 = vmatpush1.msra.mxu0 %v33
    %62 = vmatprep.subr.mxu0 0.0
    %63 = vmatpush1.msra.mxu0 %v34
    %64 = vmatprep.subr.mxu0 0.0
    %65 = vmatpush1.msra.mxu0 %v35
    %66 = vmatprep.subr.mxu0 0.0
    %67 = vmatpush1.msra.mxu0 %v36
    %68 = vmatprep.subr.mxu0 0.0
    %69 = vmatpush1.msra.mxu0 %v37
    %70 = vmatprep.subr.mxu0 0.0
    %71 = vmatpush1.msra.mxu0 %v38
    %72 = vmatprep.subr.mxu0 0.0
    %73 = vmatpush1.msra.mxu0 %v39
    %74 = vmatprep.subr.mxu0 0.0
    %75 = vmatpush1.msra.mxu0 %v40
    %76 = vmatprep.subr.mxu0 0.0
    %77 = vmatpush1.msra.mxu0 %v41
    %78 = vmatprep.subr.mxu0 0.0
    %79 = vmatpush1.msra.mxu0 %v42
    %80 = vmatprep.subr.mxu0 0.0
    %81 = vmatpush1.msra.mxu0 %v43
    %82 = vmatprep.subr.mxu0 0.0
    %83 = vmatpush1.msra.mxu0 %v44
    %84 = vmatprep.subr.mxu0 0.0
    %85 = vmatpush1.msra.mxu0 0.0
    %86 = vmatprep.subr.mxu0 0.0
    %87 = vmatpush1.msra.mxu0 0.0
    %88 = vmatprep.subr.mxu0 0.0
    %89 = vmatpush1.msra.mxu0 0.0
    %90 = vmatprep.subr.mxu0 0.0
    %91 = vmatpush1.msra.mxu0 0.0
    %92 = vmatprep.subr.mxu0 0.0
    %93 = vmatpush1.msra.mxu0 0.0
    %94 = vmatprep.subr.mxu0 0.0
    %95 = vmatpush1.msra.mxu0 0.0
    %96 = vmatprep.subr.mxu0 0.0
    %97 = vmatpush1.msra.mxu0 0.0
    %98 = vmatprep.subr.mxu0 0.0
    %99 = vmatpush1.msra.mxu0 0.0
    %100 = vmatprep.subr.mxu0 0.0
    %101 = vmatpush1.msra.mxu0 0.0
    %102 = vmatprep.subr.mxu0 0.0
    %103 = vmatpush1.msra.mxu0 0.0
    %104 = vmatprep.subr.mxu0 0.0
    %105 = vmatpush1.msra.mxu0 0.0
    %106 = vmatprep.subr.mxu0 0.0
    %107 = vmatpush1.msra.mxu0 0.0
    %108 = vmatprep.subr.mxu0 0.0
    %109 = vmatpush1.msra.mxu0 0.0
    %110 = vmatprep.subr.mxu0 0.0
    %111 = vmatpush1.msra.mxu0 0.0
    %112 = vmatprep.subr.mxu0 0.0
    %113 = vmatpush1.msra.mxu0 0.0
    %114 = vmatprep.subr.mxu0 0.0
    %115 = vmatpush1.msra.mxu0 0.0
    %116 = vmatprep.mubr.f32.mxu0 0.0
    %117 = vmatmul.mubr.f32.gmra.mrb[0].mxu0 %v28
    %v118 = vpop.f32.mrb[0].mxu0
    %v119 = vadd.f32 %v50, %v118
    %v120 = vpop.f32.mrb[0].mxu0
    %121 = vdwg.mxu0
    %vm122 = vcmp.gt.f32.partialorder %v119, 0.0
    %v123 = vmin.f32 %v119, 0.0
    %v124 = vmul.f32 %v123, 1.442695
    %v125 = vpow.pop %v124
    %v126 = vsub.f32 %v125, 1.0
    %v127 = vsel %vm122, %v119, %v126
    %s128 = scalar_lea.vmem [#allocation2], 128
    %v129 = vld [vmem:[%s128] sm:$0xff]
    %v130 = vld [vmem:[%s128 + $0x8] sm:$0xff]
    %v131 = vld [vmem:[%s128 + $0x10] sm:$0xff]
    %v132 = vld [vmem:[%s128 + $0x18] sm:$0xff]
    %v133 = vld [vmem:[%s128 + $0x20] sm:$0xff]
    %v134 = vld [vmem:[%s128 + $0x28] sm:$0xff]
    %v135 = vld [vmem:[%s128 + $0x30] sm:$0xff]
    %v136 = vld [vmem:[%s128 + $0x38] sm:$0xff]
    %v137 = vld [vmem:[%s128 + $0x40] sm:$0xff]
    %v138 = vld [vmem:[%s128 + $0x48] sm:$0xff]
    %v139 = vld [vmem:[%s128 + $0x50] sm:$0xff]
    %v140 = vld [vmem:[%s128 + $0x58] sm:$0xff]
    %v141 = vld [vmem:[%s128 + $0x60] sm:$0xff]
    %v142 = vld [vmem:[%s128 + $0x68] sm:$0xff]
    %v143 = vld [vmem:[%s128 + $0x70] sm:$0xff]
    %v144 = vld [vmem:[%s128 + $0x78] sm:$0xff]
    %s145 = scalar_lea.vmem %s2, 1
    %v146 = vld [vmem:[%s145] sm:$0x1]
    %v148 = vlaneseq
    %v149 = vshrl.u32 %v148, 7
    %v150 = vsub.s32 0, %v149
    %v151 = vrot.slane %v146, %v150
    %153 = vmatprep.subr.mxu0 0.0
    %154 = vmatpush1.msra.mxu0 %v129
    %155 = vmatprep.subr.mxu0 0.0
    %156 = vmatpush1.msra.mxu0 %v130
    %157 = vmatprep.subr.mxu0 0.0
    %158 = vmatpush1.msra.mxu0 %v131
    %159 = vmatprep.subr.mxu0 0.0
    %160 = vmatpush1.msra.mxu0 %v132
    %161 = vmatprep.subr.mxu0 0.0
    %162 = vmatpush1.msra.mxu0 %v133
    %163 = vmatprep.subr.mxu0 0.0
    %164 = vmatpush1.msra.mxu0 %v134
    %165 = vmatprep.subr.mxu0 0.0
    %166 = vmatpush1.msra.mxu0 %v135
    %167 = vmatprep.subr.mxu0 0.0
    %168 = vmatpush1.msra.mxu0 %v136
    %169 = vmatprep.subr.mxu0 0.0
    %170 = vmatpush1.msra.mxu0 %v137
    %171 = vmatprep.subr.mxu0 0.0
    %172 = vmatpush1.msra.mxu0 %v138
    %173 = vmatprep.subr.mxu0 0.0
    %174 = vmatpush1.msra.mxu0 %v139
    %175 = vmatprep.subr.mxu0 0.0
    %176 = vmatpush1.msra.mxu0 %v140
    %177 = vmatprep.subr.mxu0 0.0
    %178 = vmatpush1.msra.mxu0 %v141
    %179 = vmatprep.subr.mxu0 0.0
    %180 = vmatpush1.msra.mxu0 %v142
    %181 = vmatprep.subr.mxu0 0.0
    %182 = vmatpush1.msra.mxu0 %v143
    %183 = vmatprep.subr.mxu0 0.0
    %184 = vmatpush1.msra.mxu0 %v144
    %185 = vmatprep.subr.mxu0 0.0
    %186 = vmatpush1.msra.mxu0 0.0
    %187 = vmatprep.subr.mxu0 0.0
    %188 = vmatpush1.msra.mxu0 0.0
    %189 = vmatprep.subr.mxu0 0.0
    %190 = vmatpush1.msra.mxu0 0.0
    %191 = vmatprep.subr.mxu0 0.0
    %192 = vmatpush1.msra.mxu0 0.0
    %193 = vmatprep.subr.mxu0 0.0
    %194 = vmatpush1.msra.mxu0 0.0
    %195 = vmatprep.subr.mxu0 0.0
    %196 = vmatpush1.msra.mxu0 0.0
    %197 = vmatprep.subr.mxu0 0.0
    %198 = vmatpush1.msra.mxu0 0.0
    %199 = vmatprep.subr.mxu0 0.0
    %200 = vmatpush1.msra.mxu0 0.0
    %201 = vmatprep.subr.mxu0 0.0
    %202 = vmatpush1.msra.mxu0 0.0
    %203 = vmatprep.subr.mxu0 0.0
    %204 = vmatpush1.msra.mxu0 0.0
    %205 = vmatprep.subr.mxu0 0.0
    %206 = vmatpush1.msra.mxu0 0.0
    %207 = vmatprep.subr.mxu0 0.0
    %208 = vmatpush1.msra.mxu0 0.0
    %209 = vmatprep.subr.mxu0 0.0
    %210 = vmatpush1.msra.mxu0 0.0
    %211 = vmatprep.subr.mxu0 0.0
    %212 = vmatpush1.msra.mxu0 0.0
    %213 = vmatprep.subr.mxu0 0.0
    %214 = vmatpush1.msra.mxu0 0.0
    %215 = vmatprep.subr.mxu0 0.0
    %216 = vmatpush1.msra.mxu0 0.0
    %217 = vmatprep.mubr.f32.mxu0 0.0
    %218 = vmatmul.mubr.f32.gmra.mrb[0].mxu0 %v127
    %v219 = vpop.f32.mrb[0].mxu0
    %v220 = vadd.f32 %v151, %v219
    %v221 = vpop.f32.mrb[0].mxu0
    %222 = vdwg.mxu0
    %vm223 = vcmp.gt.f32.partialorder %v220, 0.0
    %v224 = vmin.f32 %v220, 0.0
    %v225 = vmul.f32 %v224, 1.442695
    %v226 = vpow.pop %v225
    %v227 = vsub.f32 %v226, 1.0
    %v228 = vsel %vm223, %v220, %v227
    %s229 = scalar_lea.vmem [#allocation2], 256
    %v230 = vld [vmem:[%s229] sm:$0xff]
    %v231 = vld [vmem:[%s229 + $0x8] sm:$0xff]
    %v232 = vld [vmem:[%s229 + $0x10] sm:$0xff]
    %v233 = vld [vmem:[%s229 + $0x18] sm:$0xff]
    %v234 = vld [vmem:[%s229 + $0x20] sm:$0xff]
    %v235 = vld [vmem:[%s229 + $0x28] sm:$0xff]
    %v236 = vld [vmem:[%s229 + $0x30] sm:$0xff]
    %v237 = vld [vmem:[%s229 + $0x38] sm:$0xff]
    %v238 = vld [vmem:[%s229 + $0x40] sm:$0xff]
    %v239 = vld [vmem:[%s229 + $0x48] sm:$0xff]
    %v240 = vld [vmem:[%s229 + $0x50] sm:$0xff]
    %v241 = vld [vmem:[%s229 + $0x58] sm:$0xff]
    %v242 = vld [vmem:[%s229 + $0x60] sm:$0xff]
    %v243 = vld [vmem:[%s229 + $0x68] sm:$0xff]
    %v244 = vld [vmem:[%s229 + $0x70] sm:$0xff]
    %v245 = vld [vmem:[%s229 + $0x78] sm:$0xff]
    %s246 = scalar_lea.vmem %s2, 2
    %v247 = vld [vmem:[%s246] sm:$0x1]
    %v249 = vlaneseq
    %v250 = vshrl.u32 %v249, 7
    %v251 = vsub.s32 0, %v250
    %v252 = vrot.slane %v247, %v251
    %254 = vmatprep.subr.mxu0 0.0
    %255 = vmatpush1.msra.mxu0 %v230
    %256 = vmatprep.subr.mxu0 0.0
    %257 = vmatpush1.msra.mxu0 %v231
    %258 = vmatprep.subr.mxu0 0.0
    %259 = vmatpush1.msra.mxu0 %v232
    %260 = vmatprep.subr.mxu0 0.0
    %261 = vmatpush1.msra.mxu0 %v233
    %262 = vmatprep.subr.mxu0 0.0
    %263 = vmatpush1.msra.mxu0 %v234
    %264 = vmatprep.subr.mxu0 0.0
    %265 = vmatpush1.msra.mxu0 %v235
    %266 = vmatprep.subr.mxu0 0.0
    %267 = vmatpush1.msra.mxu0 %v236
    %268 = vmatprep.subr.mxu0 0.0
    %269 = vmatpush1.msra.mxu0 %v237
    %270 = vmatprep.subr.mxu0 0.0
    %271 = vmatpush1.msra.mxu0 %v238
    %272 = vmatprep.subr.mxu0 0.0
    %273 = vmatpush1.msra.mxu0 %v239
    %274 = vmatprep.subr.mxu0 0.0
    %275 = vmatpush1.msra.mxu0 %v240
    %276 = vmatprep.subr.mxu0 0.0
    %277 = vmatpush1.msra.mxu0 %v241
    %278 = vmatprep.subr.mxu0 0.0
    %279 = vmatpush1.msra.mxu0 %v242
    %280 = vmatprep.subr.mxu0 0.0
    %281 = vmatpush1.msra.mxu0 %v243
    %282 = vmatprep.subr.mxu0 0.0
    %283 = vmatpush1.msra.mxu0 %v244
    %284 = vmatprep.subr.mxu0 0.0
    %285 = vmatpush1.msra.mxu0 %v245
    %286 = vmatprep.subr.mxu0 0.0
    %287 = vmatpush1.msra.mxu0 0.0
    %288 = vmatprep.subr.mxu0 0.0
    %289 = vmatpush1.msra.mxu0 0.0
    %290 = vmatprep.subr.mxu0 0.0
    %291 = vmatpush1.msra.mxu0 0.0
    %292 = vmatprep.subr.mxu0 0.0
    %293 = vmatpush1.msra.mxu0 0.0
    %294 = vmatprep.subr.mxu0 0.0
    %295 = vmatpush1.msra.mxu0 0.0
    %296 = vmatprep.subr.mxu0 0.0
    %297 = vmatpush1.msra.mxu0 0.0
    %298 = vmatprep.subr.mxu0 0.0
    %299 = vmatpush1.msra.mxu0 0.0
    %300 = vmatprep.subr.mxu0 0.0
    %301 = vmatpush1.msra.mxu0 0.0
    %302 = vmatprep.subr.mxu0 0.0
    %303 = vmatpush1.msra.mxu0 0.0
    %304 = vmatprep.subr.mxu0 0.0
    %305 = vmatpush1.msra.mxu0 0.0
    %306 = vmatprep.subr.mxu0 0.0
    %307 = vmatpush1.msra.mxu0 0.0
    %308 = vmatprep.subr.mxu0 0.0
    %309 = vmatpush1.msra.mxu0 0.0
    %310 = vmatprep.subr.mxu0 0.0
    %311 = vmatpush1.msra.mxu0 0.0
    %312 = vmatprep.subr.mxu0 0.0
    %313 = vmatpush1.msra.mxu0 0.0
    %314 = vmatprep.subr.mxu0 0.0
    %315 = vmatpush1.msra.mxu0 0.0
    %316 = vmatprep.subr.mxu0 0.0
    %317 = vmatpush1.msra.mxu0 0.0
    %318 = vmatprep.mubr.f32.mxu0 0.0
    %319 = vmatmul.mubr.f32.gmra.mrb[0].mxu0 %v228
    %v320 = vpop.f32.mrb[0].mxu0
    %v321 = vadd.f32 %v252, %v320
    %v322 = vpop.f32.mrb[0].mxu0
    %323 = vdwg.mxu0
    %vm324 = vcmp.gt.f32.partialorder %v321, 0.0
    %v325 = vmin.f32 %v321, 0.0
    %v326 = vmul.f32 %v325, 1.442695
    %v327 = vpow.pop %v326
    %v328 = vsub.f32 %v327, 1.0
    %v329 = vsel %vm324, %v321, %v328
    %s330 = scalar_lea.vmem [#allocation2], 384
    %v331 = vld [vmem:[%s330] sm:$0xff]
    %v332 = vld [vmem:[%s330 + $0x8] sm:$0xff]
    %v333 = vld [vmem:[%s330 + $0x10] sm:$0xff]
    %v334 = vld [vmem:[%s330 + $0x18] sm:$0xff]
    %v335 = vld [vmem:[%s330 + $0x20] sm:$0xff]
    %v336 = vld [vmem:[%s330 + $0x28] sm:$0xff]
    %v337 = vld [vmem:[%s330 + $0x30] sm:$0xff]
    %v338 = vld [vmem:[%s330 + $0x38] sm:$0xff]
    %v339 = vld [vmem:[%s330 + $0x40] sm:$0xff]
    %v340 = vld [vmem:[%s330 + $0x48] sm:$0xff]
    %v341 = vld [vmem:[%s330 + $0x50] sm:$0xff]
    %v342 = vld [vmem:[%s330 + $0x58] sm:$0xff]
    %v343 = vld [vmem:[%s330 + $0x60] sm:$0xff]
    %v344 = vld [vmem:[%s330 + $0x68] sm:$0xff]
    %v345 = vld [vmem:[%s330 + $0x70] sm:$0xff]
    %v346 = vld [vmem:[%s330 + $0x78] sm:$0xff]
    %s347 = scalar_lea.vmem %s2, 3
    %v348 = vld [vmem:[%s347] sm:$0x1]
    %v350 = vlaneseq
    %v351 = vshrl.u32 %v350, 7
    %v352 = vsub.s32 0, %v351
    %v353 = vrot.slane %v348, %v352
    %355 = vmatprep.subr.mxu0 0.0
    %356 = vmatpush1.msra.mxu0 %v331
    %357 = vmatprep.subr.mxu0 0.0
    %358 = vmatpush1.msra.mxu0 %v332
    %359 = vmatprep.subr.mxu0 0.0
    %360 = vmatpush1.msra.mxu0 %v333
    %361 = vmatprep.subr.mxu0 0.0
    %362 = vmatpush1.msra.mxu0 %v334
    %363 = vmatprep.subr.mxu0 0.0
    %364 = vmatpush1.msra.mxu0 %v335
    %365 = vmatprep.subr.mxu0 0.0
    %366 = vmatpush1.msra.mxu0 %v336
    %367 = vmatprep.subr.mxu0 0.0
    %368 = vmatpush1.msra.mxu0 %v337
    %369 = vmatprep.subr.mxu0 0.0
    %370 = vmatpush1.msra.mxu0 %v338
    %371 = vmatprep.subr.mxu0 0.0
    %372 = vmatpush1.msra.mxu0 %v339
    %373 = vmatprep.subr.mxu0 0.0
    %374 = vmatpush1.msra.mxu0 %v340
    %375 = vmatprep.subr.mxu0 0.0
    %376 = vmatpush1.msra.mxu0 %v341
    %377 = vmatprep.subr.mxu0 0.0
    %378 = vmatpush1.msra.mxu0 %v342
    %379 = vmatprep.subr.mxu0 0.0
    %380 = vmatpush1.msra.mxu0 %v343
    %381 = vmatprep.subr.mxu0 0.0
    %382 = vmatpush1.msra.mxu0 %v344
    %383 = vmatprep.subr.mxu0 0.0
    %384 = vmatpush1.msra.mxu0 %v345
    %385 = vmatprep.subr.mxu0 0.0
    %386 = vmatpush1.msra.mxu0 %v346
    %387 = vmatprep.subr.mxu0 0.0
    %388 = vmatpush1.msra.mxu0 0.0
    %389 = vmatprep.subr.mxu0 0.0
    %390 = vmatpush1.msra.mxu0 0.0
    %391 = vmatprep.subr.mxu0 0.0
    %392 = vmatpush1.msra.mxu0 0.0
    %393 = vmatprep.subr.mxu0 0.0
    %394 = vmatpush1.msra.mxu0 0.0
    %395 = vmatprep.subr.mxu0 0.0
    %396 = vmatpush1.msra.mxu0 0.0
    %397 = vmatprep.subr.mxu0 0.0
    %398 = vmatpush1.msra.mxu0 0.0
    %399 = vmatprep.subr.mxu0 0.0
    %400 = vmatpush1.msra.mxu0 0.0
    %401 = vmatprep.subr.mxu0 0.0
    %402 = vmatpush1.msra.mxu0 0.0
    %403 = vmatprep.subr.mxu0 0.0
    %404 = vmatpush1.msra.mxu0 0.0
    %405 = vmatprep.subr.mxu0 0.0
    %406 = vmatpush1.msra.mxu0 0.0
    %407 = vmatprep.subr.mxu0 0.0
    %408 = vmatpush1.msra.mxu0 0.0
    %409 = vmatprep.subr.mxu0 0.0
    %410 = vmatpush1.msra.mxu0 0.0
    %411 = vmatprep.subr.mxu0 0.0
    %412 = vmatpush1.msra.mxu0 0.0
    %413 = vmatprep.subr.mxu0 0.0
    %414 = vmatpush1.msra.mxu0 0.0
    %415 = vmatprep.subr.mxu0 0.0
    %416 = vmatpush1.msra.mxu0 0.0
    %417 = vmatprep.subr.mxu0 0.0
    %418 = vmatpush1.msra.mxu0 0.0
    %419 = vmatprep.mubr.f32.mxu0 0.0
    %420 = vmatmul.mubr.f32.gmra.mrb[0].mxu0 %v329
    %v421 = vpop.f32.mrb[0].mxu0
    %v422 = vadd.f32 %v353, %v421
    %v423 = vpop.f32.mrb[0].mxu0
    %424 = vdwg.mxu0
    %v425 = vmax.f32 %v422, -1.0
    %v426 = vmin.f32 %v425, 1.0
    %v427 = vsub.f32 %v426, -1.0
    %v428 = vmul.f32 %v427, 7.5
    %v429 = vround.ne.pseudo %v428
    %v430 = vmul.f32 %v429, 0.13333334
    %v431 = vadd.f32 %v430, -1.0
    %s432 = scalar_lea.vmem [#allocation2], 512
    %v433 = vld [vmem:[%s432] sm:$0xff]
    %v434 = vld [vmem:[%s432 + $0x8] sm:$0xff]
    %v435 = vld [vmem:[%s432 + $0x10] sm:$0xff]
    %v436 = vld [vmem:[%s432 + $0x18] sm:$0xff]
    %v437 = vld [vmem:[%s432 + $0x20] sm:$0xff]
    %v438 = vld [vmem:[%s432 + $0x28] sm:$0xff]
    %v439 = vld [vmem:[%s432 + $0x30] sm:$0xff]
    %v440 = vld [vmem:[%s432 + $0x38] sm:$0xff]
    %v441 = vld [vmem:[%s432 + $0x40] sm:$0xff]
    %v442 = vld [vmem:[%s432 + $0x48] sm:$0xff]
    %v443 = vld [vmem:[%s432 + $0x50] sm:$0xff]
    %v444 = vld [vmem:[%s432 + $0x58] sm:$0xff]
    %v445 = vld [vmem:[%s432 + $0x60] sm:$0xff]
    %v446 = vld [vmem:[%s432 + $0x68] sm:$0xff]
    %v447 = vld [vmem:[%s432 + $0x70] sm:$0xff]
    %v448 = vld [vmem:[%s432 + $0x78] sm:$0xff]
    %s449 = scalar_lea.vmem %s2, 4
    %v450 = vld [vmem:[%s449] sm:$0x1]
    %v452 = vlaneseq
    %v453 = vshrl.u32 %v452, 7
    %v454 = vsub.s32 0, %v453
    %v455 = vrot.slane %v450, %v454
    %457 = vmatprep.subr.mxu0 0.0
    %458 = vmatpush1.msra.mxu0 %v433
    %459 = vmatprep.subr.mxu0 0.0
    %460 = vmatpush1.msra.mxu0 %v434
    %461 = vmatprep.subr.mxu0 0.0
    %462 = vmatpush1.msra.mxu0 %v435
    %463 = vmatprep.subr.mxu0 0.0
    %464 = vmatpush1.msra.mxu0 %v436
    %465 = vmatprep.subr.mxu0 0.0
    %466 = vmatpush1.msra.mxu0 %v437
    %467 = vmatprep.subr.mxu0 0.0
    %468 = vmatpush1.msra.mxu0 %v438
    %469 = vmatprep.subr.mxu0 0.0
    %470 = vmatpush1.msra.mxu0 %v439
    %471 = vmatprep.subr.mxu0 0.0
    %472 = vmatpush1.msra.mxu0 %v440
    %473 = vmatprep.subr.mxu0 0.0
    %474 = vmatpush1.msra.mxu0 %v441
    %475 = vmatprep.subr.mxu0 0.0
    %476 = vmatpush1.msra.mxu0 %v442
    %477 = vmatprep.subr.mxu0 0.0
    %478 = vmatpush1.msra.mxu0 %v443
    %479 = vmatprep.subr.mxu0 0.0
    %480 = vmatpush1.msra.mxu0 %v444
    %481 = vmatprep.subr.mxu0 0.0
    %482 = vmatpush1.msra.mxu0 %v445
    %483 = vmatprep.subr.mxu0 0.0
    %484 = vmatpush1.msra.mxu0 %v446
    %485 = vmatprep.subr.mxu0 0.0
    %486 = vmatpush1.msra.mxu0 %v447
    %487 = vmatprep.subr.mxu0 0.0
    %488 = vmatpush1.msra.mxu0 %v448
    %489 = vmatprep.subr.mxu0 0.0
    %490 = vmatpush1.msra.mxu0 0.0
    %491 = vmatprep.subr.mxu0 0.0
    %492 = vmatpush1.msra.mxu0 0.0
    %493 = vmatprep.subr.mxu0 0.0
    %494 = vmatpush1.msra.mxu0 0.0
    %495 = vmatprep.subr.mxu0 0.0
    %496 = vmatpush1.msra.mxu0 0.0
    %497 = vmatprep.subr.mxu0 0.0
    %498 = vmatpush1.msra.mxu0 0.0
    %499 = vmatprep.subr.mxu0 0.0
    %500 = vmatpush1.msra.mxu0 0.0
    %501 = vmatprep.subr.mxu0 0.0
    %502 = vmatpush1.msra.mxu0 0.0
    %503 = vmatprep.subr.mxu0 0.0
    %504 = vmatpush1.msra.mxu0 0.0
    %505 = vmatprep.subr.mxu0 0.0
    %506 = vmatpush1.msra.mxu0 0.0
    %507 = vmatprep.subr.mxu0 0.0
    %508 = vmatpush1.msra.mxu0 0.0
    %509 = vmatprep.subr.mxu0 0.0
    %510 = vmatpush1.msra.mxu0 0.0
    %511 = vmatprep.subr.mxu0 0.0
    %512 = vmatpush1.msra.mxu0 0.0
    %513 = vmatprep.subr.mxu0 0.0
    %514 = vmatpush1.msra.mxu0 0.0
    %515 = vmatprep.subr.mxu0 0.0
    %516 = vmatpush1.msra.mxu0 0.0
    %517 = vmatprep.subr.mxu0 0.0
    %518 = vmatpush1.msra.mxu0 0.0
    %519 = vmatprep.subr.mxu0 0.0
    %520 = vmatpush1.msra.mxu0 0.0
    %521 = vmatprep.mubr.f32.mxu0 0.0
    %522 = vmatmul.mubr.f32.gmra.mrb[0].mxu0 %v431
    %v523 = vpop.f32.mrb[0].mxu0
    %v524 = vadd.f32 %v455, %v523
    %v525 = vpop.f32.mrb[0].mxu0
    %526 = vdwg.mxu0
    %vm527 = vcmp.gt.f32.partialorder %v524, 0.0
    %v528 = vmin.f32 %v524, 0.0
    %v529 = vmul.f32 %v528, 1.442695
    %v530 = vpow.pop %v529
    %v531 = vsub.f32 %v530, 1.0
    %v532 = vsel %vm527, %v524, %v531
    %s533 = scalar_lea.vmem [#allocation2], 640
    %v534 = vld [vmem:[%s533] sm:$0xff]
    %v535 = vld [vmem:[%s533 + $0x8] sm:$0xff]
    %v536 = vld [vmem:[%s533 + $0x10] sm:$0xff]
    %v537 = vld [vmem:[%s533 + $0x18] sm:$0xff]
    %v538 = vld [vmem:[%s533 + $0x20] sm:$0xff]
    %v539 = vld [vmem:[%s533 + $0x28] sm:$0xff]
    %v540 = vld [vmem:[%s533 + $0x30] sm:$0xff]
    %v541 = vld [vmem:[%s533 + $0x38] sm:$0xff]
    %v542 = vld [vmem:[%s533 + $0x40] sm:$0xff]
    %v543 = vld [vmem:[%s533 + $0x48] sm:$0xff]
    %v544 = vld [vmem:[%s533 + $0x50] sm:$0xff]
    %v545 = vld [vmem:[%s533 + $0x58] sm:$0xff]
    %v546 = vld [vmem:[%s533 + $0x60] sm:$0xff]
    %v547 = vld [vmem:[%s533 + $0x68] sm:$0xff]
    %v548 = vld [vmem:[%s533 + $0x70] sm:$0xff]
    %v549 = vld [vmem:[%s533 + $0x78] sm:$0xff]
    %s550 = scalar_lea.vmem %s2, 5
    %v551 = vld [vmem:[%s550] sm:$0x1]
    %v553 = vlaneseq
    %v554 = vshrl.u32 %v553, 7
    %v555 = vsub.s32 0, %v554
    %v556 = vrot.slane %v551, %v555
    %558 = vmatprep.subr.mxu0 0.0
    %559 = vmatpush1.msra.mxu0 %v534
    %560 = vmatprep.subr.mxu0 0.0
    %561 = vmatpush1.msra.mxu0 %v535
    %562 = vmatprep.subr.mxu0 0.0
    %563 = vmatpush1.msra.mxu0 %v536
    %564 = vmatprep.subr.mxu0 0.0
    %565 = vmatpush1.msra.mxu0 %v537
    %566 = vmatprep.subr.mxu0 0.0
    %567 = vmatpush1.msra.mxu0 %v538
    %568 = vmatprep.subr.mxu0 0.0
    %569 = vmatpush1.msra.mxu0 %v539
    %570 = vmatprep.subr.mxu0 0.0
    %571 = vmatpush1.msra.mxu0 %v540
    %572 = vmatprep.subr.mxu0 0.0
    %573 = vmatpush1.msra.mxu0 %v541
    %574 = vmatprep.subr.mxu0 0.0
    %575 = vmatpush1.msra.mxu0 %v542
    %576 = vmatprep.subr.mxu0 0.0
    %577 = vmatpush1.msra.mxu0 %v543
    %578 = vmatprep.subr.mxu0 0.0
    %579 = vmatpush1.msra.mxu0 %v544
    %580 = vmatprep.subr.mxu0 0.0
    %581 = vmatpush1.msra.mxu0 %v545
    %582 = vmatprep.subr.mxu0 0.0
    %583 = vmatpush1.msra.mxu0 %v546
    %584 = vmatprep.subr.mxu0 0.0
    %585 = vmatpush1.msra.mxu0 %v547
    %586 = vmatprep.subr.mxu0 0.0
    %587 = vmatpush1.msra.mxu0 %v548
    %588 = vmatprep.subr.mxu0 0.0
    %589 = vmatpush1.msra.mxu0 %v549
    %590 = vmatprep.subr.mxu0 0.0
    %591 = vmatpush1.msra.mxu0 0.0
    %592 = vmatprep.subr.mxu0 0.0
    %593 = vmatpush1.msra.mxu0 0.0
    %594 = vmatprep.subr.mxu0 0.0
    %595 = vmatpush1.msra.mxu0 0.0
    %596 = vmatprep.subr.mxu0 0.0
    %597 = vmatpush1.msra.mxu0 0.0
    %598 = vmatprep.subr.mxu0 0.0
    %599 = vmatpush1.msra.mxu0 0.0
    %600 = vmatprep.subr.mxu0 0.0
    %601 = vmatpush1.msra.mxu0 0.0
    %602 = vmatprep.subr.mxu0 0.0
    %603 = vmatpush1.msra.mxu0 0.0
    %604 = vmatprep.subr.mxu0 0.0
    %605 = vmatpush1.msra.mxu0 0.0
    %606 = vmatprep.subr.mxu0 0.0
    %607 = vmatpush1.msra.mxu0 0.0
    %608 = vmatprep.subr.mxu0 0.0
    %609 = vmatpush1.msra.mxu0 0.0
    %610 = vmatprep.subr.mxu0 0.0
    %611 = vmatpush1.msra.mxu0 0.0
    %612 = vmatprep.subr.mxu0 0.0
    %613 = vmatpush1.msra.mxu0 0.0
    %614 = vmatprep.subr.mxu0 0.0
    %615 = vmatpush1.msra.mxu0 0.0
    %616 = vmatprep.subr.mxu0 0.0
    %617 = vmatpush1.msra.mxu0 0.0
    %618 = vmatprep.subr.mxu0 0.0
    %619 = vmatpush1.msra.mxu0 0.0
    %620 = vmatprep.subr.mxu0 0.0
    %621 = vmatpush1.msra.mxu0 0.0
    %622 = vmatprep.mubr.f32.mxu0 0.0
    %623 = vmatmul.mubr.f32.gmra.mrb[0].mxu0 %v532
    %v624 = vpop.f32.mrb[0].mxu0
    %v625 = vadd.f32 %v556, %v624
    %v626 = vpop.f32.mrb[0].mxu0
    %627 = vdwg.mxu0
    %vm628 = vcmp.gt.f32.partialorder %v625, 0.0
    %v629 = vmin.f32 %v625, 0.0
    %v630 = vmul.f32 %v629, 1.442695
    %v631 = vpow.pop %v630
    %v632 = vsub.f32 %v631, 1.0
    %v633 = vsel %vm628, %v625, %v632
    %s634 = scalar_lea.vmem [#allocation2], 768
    %v635 = vld [vmem:[%s634] sm:$0xff]
    %v636 = vld [vmem:[%s634 + $0x8] sm:$0xff]
    %v637 = vld [vmem:[%s634 + $0x10] sm:$0xff]
    %v638 = vld [vmem:[%s634 + $0x18] sm:$0xff]
    %v639 = vld [vmem:[%s634 + $0x20] sm:$0xff]
    %v640 = vld [vmem:[%s634 + $0x28] sm:$0xff]
    %v641 = vld [vmem:[%s634 + $0x30] sm:$0xff]
    %v642 = vld [vmem:[%s634 + $0x38] sm:$0xff]
    %v643 = vld [vmem:[%s634 + $0x40] sm:$0xff]
    %v644 = vld [vmem:[%s634 + $0x48] sm:$0xff]
    %v645 = vld [vmem:[%s634 + $0x50] sm:$0xff]
    %v646 = vld [vmem:[%s634 + $0x58] sm:$0xff]
    %v647 = vld [vmem:[%s634 + $0x60] sm:$0xff]
    %v648 = vld [vmem:[%s634 + $0x68] sm:$0xff]
    %v649 = vld [vmem:[%s634 + $0x70] sm:$0xff]
    %v650 = vld [vmem:[%s634 + $0x78] sm:$0xff]
    %s651 = scalar_lea.vmem %s2, 6
    %v652 = vld [vmem:[%s651] sm:$0x1]
    %v654 = vlaneseq
    %v655 = vshrl.u32 %v654, 7
    %v656 = vsub.s32 0, %v655
    %v657 = vrot.slane %v652, %v656
    %659 = vmatprep.subr.mxu0 0.0
    %660 = vmatpush1.msra.mxu0 %v635
    %661 = vmatprep.subr.mxu0 0.0
    %662 = vmatpush1.msra.mxu0 %v636
    %663 = vmatprep.subr.mxu0 0.0
    %664 = vmatpush1.msra.mxu0 %v637
    %665 = vmatprep.subr.mxu0 0.0
    %666 = vmatpush1.msra.mxu0 %v638
    %667 = vmatprep.subr.mxu0 0.0
    %668 = vmatpush1.msra.mxu0 %v639
    %669 = vmatprep.subr.mxu0 0.0
    %670 = vmatpush1.msra.mxu0 %v640
    %671 = vmatprep.subr.mxu0 0.0
    %672 = vmatpush1.msra.mxu0 %v641
    %673 = vmatprep.subr.mxu0 0.0
    %674 = vmatpush1.msra.mxu0 %v642
    %675 = vmatprep.subr.mxu0 0.0
    %676 = vmatpush1.msra.mxu0 %v643
    %677 = vmatprep.subr.mxu0 0.0
    %678 = vmatpush1.msra.mxu0 %v644
    %679 = vmatprep.subr.mxu0 0.0
    %680 = vmatpush1.msra.mxu0 %v645
    %681 = vmatprep.subr.mxu0 0.0
    %682 = vmatpush1.msra.mxu0 %v646
    %683 = vmatprep.subr.mxu0 0.0
    %684 = vmatpush1.msra.mxu0 %v647
    %685 = vmatprep.subr.mxu0 0.0
    %686 = vmatpush1.msra.mxu0 %v648
    %687 = vmatprep.subr.mxu0 0.0
    %688 = vmatpush1.msra.mxu0 %v649
    %689 = vmatprep.subr.mxu0 0.0
    %690 = vmatpush1.msra.mxu0 %v650
    %691 = vmatprep.subr.mxu0 0.0
    %692 = vmatpush1.msra.mxu0 0.0
    %693 = vmatprep.subr.mxu0 0.0
    %694 = vmatpush1.msra.mxu0 0.0
    %695 = vmatprep.subr.mxu0 0.0
    %696 = vmatpush1.msra.mxu0 0.0
    %697 = vmatprep.subr.mxu0 0.0
    %698 = vmatpush1.msra.mxu0 0.0
    %699 = vmatprep.subr.mxu0 0.0
    %700 = vmatpush1.msra.mxu0 0.0
    %701 = vmatprep.subr.mxu0 0.0
    %702 = vmatpush1.msra.mxu0 0.0
    %703 = vmatprep.subr.mxu0 0.0
    %704 = vmatpush1.msra.mxu0 0.0
    %705 = vmatprep.subr.mxu0 0.0
    %706 = vmatpush1.msra.mxu0 0.0
    %707 = vmatprep.subr.mxu0 0.0
    %708 = vmatpush1.msra.mxu0 0.0
    %709 = vmatprep.subr.mxu0 0.0
    %710 = vmatpush1.msra.mxu0 0.0
    %711 = vmatprep.subr.mxu0 0.0
    %712 = vmatpush1.msra.mxu0 0.0
    %713 = vmatprep.subr.mxu0 0.0
    %714 = vmatpush1.msra.mxu0 0.0
    %715 = vmatprep.subr.mxu0 0.0
    %716 = vmatpush1.msra.mxu0 0.0
    %717 = vmatprep.subr.mxu0 0.0
    %718 = vmatpush1.msra.mxu0 0.0
    %719 = vmatprep.subr.mxu0 0.0
    %720 = vmatpush1.msra.mxu0 0.0
    %721 = vmatprep.subr.mxu0 0.0
    %722 = vmatpush1.msra.mxu0 0.0
    %723 = vmatprep.mubr.f32.mxu0 0.0
    %724 = vmatmul.mubr.f32.gmra.mrb[0].mxu0 %v633
    %v725 = vpop.f32.mrb[0].mxu0
    %v726 = vadd.f32 %v657, %v725
    %v727 = vpop.f32.mrb[0].mxu0
    %728 = vdwg.mxu0
    %vm729 = vcmp.gt.f32.partialorder %v726, 0.0
    %v730 = vmin.f32 %v726, 0.0
    %v731 = vmul.f32 %v730, 1.442695
    %v732 = vpow.pop %v731
    %v733 = vsub.f32 %v732, 1.0
    %v734 = vsel %vm729, %v726, %v733
    %s735 = scalar_lea.vmem [#allocation2], 896
    %v736 = vld [vmem:[%s735] sm:$0xff]
    %v737 = vld [vmem:[%s735 + $0x8] sm:$0xff]
    %v738 = vld [vmem:[%s735 + $0x10] sm:$0xff]
    %v739 = vld [vmem:[%s735 + $0x18] sm:$0xff]
    %v740 = vld [vmem:[%s735 + $0x20] sm:$0xff]
    %v741 = vld [vmem:[%s735 + $0x28] sm:$0xff]
    %v742 = vld [vmem:[%s735 + $0x30] sm:$0xff]
    %v743 = vld [vmem:[%s735 + $0x38] sm:$0xff]
    %v744 = vld [vmem:[%s735 + $0x40] sm:$0xff]
    %v745 = vld [vmem:[%s735 + $0x48] sm:$0xff]
    %v746 = vld [vmem:[%s735 + $0x50] sm:$0xff]
    %v747 = vld [vmem:[%s735 + $0x58] sm:$0xff]
    %v748 = vld [vmem:[%s735 + $0x60] sm:$0xff]
    %v749 = vld [vmem:[%s735 + $0x68] sm:$0xff]
    %v750 = vld [vmem:[%s735 + $0x70] sm:$0xff]
    %v751 = vld [vmem:[%s735 + $0x78] sm:$0xff]
    %s752 = scalar_lea.vmem %s2, 7
    %v753 = vld [vmem:[%s752] sm:$0x1]
    %v755 = vlaneseq
    %v756 = vshrl.u32 %v755, 7
    %v757 = vsub.s32 0, %v756
    %v758 = vrot.slane %v753, %v757
    %760 = vmatprep.subr.mxu0 0.0
    %761 = vmatpush1.msra.mxu0 %v736
    %762 = vmatprep.subr.mxu0 0.0
    %763 = vmatpush1.msra.mxu0 %v737
    %764 = vmatprep.subr.mxu0 0.0
    %765 = vmatpush1.msra.mxu0 %v738
    %766 = vmatprep.subr.mxu0 0.0
    %767 = vmatpush1.msra.mxu0 %v739
    %768 = vmatprep.subr.mxu0 0.0
    %769 = vmatpush1.msra.mxu0 %v740
    %770 = vmatprep.subr.mxu0 0.0
    %771 = vmatpush1.msra.mxu0 %v741
    %772 = vmatprep.subr.mxu0 0.0
    %773 = vmatpush1.msra.mxu0 %v742
    %774 = vmatprep.subr.mxu0 0.0
    %775 = vmatpush1.msra.mxu0 %v743
    %776 = vmatprep.subr.mxu0 0.0
    %777 = vmatpush1.msra.mxu0 %v744
    %778 = vmatprep.subr.mxu0 0.0
    %779 = vmatpush1.msra.mxu0 %v745
    %780 = vmatprep.subr.mxu0 0.0
    %781 = vmatpush1.msra.mxu0 %v746
    %782 = vmatprep.subr.mxu0 0.0
    %783 = vmatpush1.msra.mxu0 %v747
    %784 = vmatprep.subr.mxu0 0.0
    %785 = vmatpush1.msra.mxu0 %v748
    %786 = vmatprep.subr.mxu0 0.0
    %787 = vmatpush1.msra.mxu0 %v749
    %788 = vmatprep.subr.mxu0 0.0
    %789 = vmatpush1.msra.mxu0 %v750
    %790 = vmatprep.subr.mxu0 0.0
    %791 = vmatpush1.msra.mxu0 %v751
    %792 = vmatprep.subr.mxu0 0.0
    %793 = vmatpush1.msra.mxu0 0.0
    %794 = vmatprep.subr.mxu0 0.0
    %795 = vmatpush1.msra.mxu0 0.0
    %796 = vmatprep.subr.mxu0 0.0
    %797 = vmatpush1.msra.mxu0 0.0
    %798 = vmatprep.subr.mxu0 0.0
    %799 = vmatpush1.msra.mxu0 0.0
    %800 = vmatprep.subr.mxu0 0.0
    %801 = vmatpush1.msra.mxu0 0.0
    %802 = vmatprep.subr.mxu0 0.0
    %803 = vmatpush1.msra.mxu0 0.0
    %804 = vmatprep.subr.mxu0 0.0
    %805 = vmatpush1.msra.mxu0 0.0
    %806 = vmatprep.subr.mxu0 0.0
    %807 = vmatpush1.msra.mxu0 0.0
    %808 = vmatprep.subr.mxu0 0.0
    %809 = vmatpush1.msra.mxu0 0.0
    %810 = vmatprep.subr.mxu0 0.0
    %811 = vmatpush1.msra.mxu0 0.0
    %812 = vmatprep.subr.mxu0 0.0
    %813 = vmatpush1.msra.mxu0 0.0
    %814 = vmatprep.subr.mxu0 0.0
    %815 = vmatpush1.msra.mxu0 0.0
    %816 = vmatprep.subr.mxu0 0.0
    %817 = vmatpush1.msra.mxu0 0.0
    %818 = vmatprep.subr.mxu0 0.0
    %819 = vmatpush1.msra.mxu0 0.0
    %820 = vmatprep.subr.mxu0 0.0
    %821 = vmatpush1.msra.mxu0 0.0
    %822 = vmatprep.subr.mxu0 0.0
    %823 = vmatpush1.msra.mxu0 0.0
    %824 = vmatprep.mubr.f32.mxu0 0.0
    %825 = vmatmul.mubr.f32.gmra.mrb[0].mxu0 %v734
    %v826 = vpop.f32.mrb[0].mxu0
    %v827 = vadd.f32 %v758, %v826
    %v828 = vpop.f32.mrb[0].mxu0
    %829 = vdwg.mxu0
    %vm830 = vcmp.gt.f32.partialorder %v827, 0.0
    %v831 = vmin.f32 %v827, 0.0
    %v832 = vmul.f32 %v831, 1.442695
    %v833 = vpow.pop %v832
    %v834 = vsub.f32 %v833, 1.0
    %v835 = vsel %vm830, %v827, %v834
    %s836 = scalar_lea.vmem [#allocation2], 1024
    %v837 = vld [vmem:[%s836] sm:$0xff]
    %v838 = vld [vmem:[%s836 + $0x8] sm:$0xff]
    %v839 = vld [vmem:[%s836 + $0x10] sm:$0xff]
    %v840 = vld [vmem:[%s836 + $0x18] sm:$0xff]
    %v841 = vld [vmem:[%s836 + $0x20] sm:$0xff]
    %v842 = vld [vmem:[%s836 + $0x28] sm:$0xff]
    %v843 = vld [vmem:[%s836 + $0x30] sm:$0xff]
    %v844 = vld [vmem:[%s836 + $0x38] sm:$0xff]
    %v845 = vld [vmem:[%s836 + $0x40] sm:$0xff]
    %v846 = vld [vmem:[%s836 + $0x48] sm:$0xff]
    %v847 = vld [vmem:[%s836 + $0x50] sm:$0xff]
    %v848 = vld [vmem:[%s836 + $0x58] sm:$0xff]
    %v849 = vld [vmem:[%s836 + $0x60] sm:$0xff]
    %v850 = vld [vmem:[%s836 + $0x68] sm:$0xff]
    %v851 = vld [vmem:[%s836 + $0x70] sm:$0xff]
    %v852 = vld [vmem:[%s836 + $0x78] sm:$0xff]
    %s853 = scalar_lea.vmem %s2, 8
    %v854 = vld [vmem:[%s853] sm:$0x1]
    %v856 = vlaneseq
    %v857 = vshrl.u32 %v856, 7
    %v858 = vsub.s32 0, %v857
    %v859 = vrot.slane %v854, %v858
    %861 = vmatprep.subr.mxu0 0.0
    %862 = vmatpush1.msra.mxu0 %v837
    %863 = vmatprep.subr.mxu0 0.0
    %864 = vmatpush1.msra.mxu0 %v838
    %865 = vmatprep.subr.mxu0 0.0
    %866 = vmatpush1.msra.mxu0 %v839
    %867 = vmatprep.subr.mxu0 0.0
    %868 = vmatpush1.msra.mxu0 %v840
    %869 = vmatprep.subr.mxu0 0.0
    %870 = vmatpush1.msra.mxu0 %v841
    %871 = vmatprep.subr.mxu0 0.0
    %872 = vmatpush1.msra.mxu0 %v842
    %873 = vmatprep.subr.mxu0 0.0
    %874 = vmatpush1.msra.mxu0 %v843
    %875 = vmatprep.subr.mxu0 0.0
    %876 = vmatpush1.msra.mxu0 %v844
    %877 = vmatprep.subr.mxu0 0.0
    %878 = vmatpush1.msra.mxu0 %v845
    %879 = vmatprep.subr.mxu0 0.0
    %880 = vmatpush1.msra.mxu0 %v846
    %881 = vmatprep.subr.mxu0 0.0
    %882 = vmatpush1.msra.mxu0 %v847
    %883 = vmatprep.subr.mxu0 0.0
    %884 = vmatpush1.msra.mxu0 %v848
    %885 = vmatprep.subr.mxu0 0.0
    %886 = vmatpush1.msra.mxu0 %v849
    %887 = vmatprep.subr.mxu0 0.0
    %888 = vmatpush1.msra.mxu0 %v850
    %889 = vmatprep.subr.mxu0 0.0
    %890 = vmatpush1.msra.mxu0 %v851
    %891 = vmatprep.subr.mxu0 0.0
    %892 = vmatpush1.msra.mxu0 %v852
    %893 = vmatprep.subr.mxu0 0.0
    %894 = vmatpush1.msra.mxu0 0.0
    %895 = vmatprep.subr.mxu0 0.0
    %896 = vmatpush1.msra.mxu0 0.0
    %897 = vmatprep.subr.mxu0 0.0
    %898 = vmatpush1.msra.mxu0 0.0
    %899 = vmatprep.subr.mxu0 0.0
    %900 = vmatpush1.msra.mxu0 0.0
    %901 = vmatprep.subr.mxu0 0.0
    %902 = vmatpush1.msra.mxu0 0.0
    %903 = vmatprep.subr.mxu0 0.0
    %904 = vmatpush1.msra.mxu0 0.0
    %905 = vmatprep.subr.mxu0 0.0
    %906 = vmatpush1.msra.mxu0 0.0
    %907 = vmatprep.subr.mxu0 0.0
    %908 = vmatpush1.msra.mxu0 0.0
    %909 = vmatprep.subr.mxu0 0.0
    %910 = vmatpush1.msra.mxu0 0.0
    %911 = vmatprep.subr.mxu0 0.0
    %912 = vmatpush1.msra.mxu0 0.0
    %913 = vmatprep.subr.mxu0 0.0
    %914 = vmatpush1.msra.mxu0 0.0
    %915 = vmatprep.subr.mxu0 0.0
    %916 = vmatpush1.msra.mxu0 0.0
    %917 = vmatprep.subr.mxu0 0.0
    %918 = vmatpush1.msra.mxu0 0.0
    %919 = vmatprep.subr.mxu0 0.0
    %920 = vmatpush1.msra.mxu0 0.0
    %921 = vmatprep.subr.mxu0 0.0
    %922 = vmatpush1.msra.mxu0 0.0
    %923 = vmatprep.subr.mxu0 0.0
    %924 = vmatpush1.msra.mxu0 0.0
    %925 = vmatprep.mubr.f32.mxu0 0.0
    %926 = vmatmul.mubr.f32.gmra.mrb[0].mxu0 %v835
    %v927 = vpop.f32.mrb[0].mxu0
    %v928 = vadd.f32 %v859, %v927
    %v929 = vpop.f32.mrb[0].mxu0
    %930 = vdwg.mxu0
    %v931 = vtanh.pop %v928
    %932 = vst [vmem:[%s3] sm:$0xff] %v931
    // Predicated region
    $region18: #{neural_net_conv_forward.1} parent=1 // pred_check
      _
    $region19: #{neural_net_conv_forward.1} parent=1 // pred_check_branch
      %934 = sbr.rel (0) target = $region21
    $region20: #{neural_net_conv_forward.1} parent=1 // pred_region
      _
    $region21: #{neural_net_conv_forward.1} parent=1 // pred_fallthru
      _
    // Predicated region
    $region22: #{neural_net_conv_forward.1} parent=1 // pred_check
      _
    $region23: #{neural_net_conv_forward.1} parent=1 // pred_check_branch
      %936 = sbr.rel (0) target = $region25
    $region24: #{neural_net_conv_forward.1} parent=1 // pred_region
      _
    $region25: #{neural_net_conv_forward.1} parent=1 // pred_fallthru
      _
    %937 = vsyncpa [#allocation3], 1

</llo_original>
